<compile_context>
chip_gen: v5e
topology: v5e:2x2
jax: 0.10.0
libtpu: 0.0.40
codegen_flags: <defaults>
</compile_context>

<pallas_src>
import functools

import numpy as np
import jax
import jax.numpy as jnp
from jax.experimental import pallas as pl
from jax.experimental.pallas import tpu as pltpu

# ----------------------- "opts" (small, deterministic) -----------------------
SAMP_FREQ = 8000.0
FRAME_LEN = 200          # 25 ms at 8 kHz
FRAME_SHIFT = 80         # 10 ms at 8 kHz
HOP = FRAME_SHIFT
N_FFT = 256              # next power of two >= FRAME_LEN
NUM_BINS = 23            # kaldi default num_mel_bins
LOW_FREQ = 20.0
HIGH_FREQ = SAMP_FREQ / 2.0
PREEMPH = 0.97
EPS = float(np.finfo(np.float32).eps)

K_BINS = N_FFT // 2 + 1              # rfft bins (reference path)
KE = N_FFT // 2                      # bins kept in kernel: 0..127 (bin 0 & Nyquist
                                     # carry ~zero mel weight for these opts)
N_SUB = -(-FRAME_LEN // FRAME_SHIFT) # 3 hop-sized sub-blocks per frame
K_DFT = N_SUB * FRAME_SHIFT          # 240 = im2col width (rows 200..239 of the DFT
                                     # matrix are zero)


# --------------------------- parameter construction --------------------------
def povey_window(length: int) -> np.ndarray:
    n = np.arange(length, dtype=np.float64)
    return (0.5 - 0.5 * np.cos(2.0 * np.pi * n / (length - 1))) ** 0.85


def dft_matrices(frame_len: int, n_fft: int) -> tuple[np.ndarray, np.ndarray]:
    # Reference path: full 129-bin cos / -sin matrices.
    n = np.arange(frame_len, dtype=np.float64)[:, None]        # (L, 1)
    k = np.arange(n_fft // 2 + 1, dtype=np.float64)[None, :]   # (1, K)
    ang = 2.0 * np.pi * n * k / n_fft
    return np.cos(ang).astype(np.float32), (-np.sin(ang)).astype(np.float32)


def mel_banks(num_bins: int, n_fft: int, samp_freq: float,
              low_freq: float, high_freq: float) -> np.ndarray:
    def mel(f):
        return 1127.0 * np.log(1.0 + f / 700.0)

    fft_bin_width = samp_freq / n_fft
    mel_low = mel(low_freq)
    mel_high = mel(high_freq)
    mel_delta = (mel_high - mel_low) / (num_bins + 1)

    k = np.arange(n_fft // 2 + 1, dtype=np.float64)
    mel_k = mel(k * fft_bin_width)                             # (K,)

    bins = np.arange(num_bins, dtype=np.float64)
    left = mel_low + bins * mel_delta                          # (F,)
    center = mel_low + (bins + 1.0) * mel_delta
    right = mel_low + (bins + 2.0) * mel_delta

    mk = mel_k[None, :]                                        # (1, K)
    up = (mk - left[:, None]) / (center - left)[:, None]
    down = (right[:, None] - mk) / (right - center)[:, None]
    w = np.where(mk <= center[:, None], up, down)
    w = np.where((mk > left[:, None]) & (mk < right[:, None]), w, 0.0)
    return w.astype(np.float32)                                # (F, K)


@functools.lru_cache(maxsize=None)
def _host_constants() -> tuple[np.ndarray, np.ndarray]:
    """Returns (dft240, mel2):
       dft240: (240, 256) f32 — folded DC-removal∘pre-emphasis∘Povey-window∘packed-rDFT,
               zero rows for sample offsets 200..239 (im2col overrun of the frame).
       mel2:   (256, 23)  f32 — mel filterbank (bins 0..127) stacked twice so the
               power-spectrum add is folded into the mel matmul."""
    L = FRAME_LEN
    n = np.arange(L, dtype=np.float64)
    w = povey_window(L)                                        # (L,), float64
    # DC removal (row-vector form): y = x @ (I - 1/L)
    A = np.eye(L) - np.full((L, L), 1.0 / L)
    # Pre-emphasis: y[j] = x[j] - p*x[j-1] (j>=1), y[0] = (1-p)*x[0]
    P = np.eye(L)
    P[0, 0] = 1.0 - PREEMPH
    P[np.arange(L - 1), np.arange(1, L)] = -PREEMPH
    # Packed real-DFT, bins 0..KE-1 for both halves (sin_0 == 0; dropped bins have
    # ~zero mel weight — asserted below).
    k = np.arange(KE, dtype=np.float64)[None, :]               # (1, KE)
    ang = 2.0 * np.pi * n[:, None] * k / N_FFT                 # (L, KE)
    C = np.concatenate([np.cos(ang), -np.sin(ang)], axis=1)    # (L, 2*KE)
    M = A @ P @ (w[:, None] * C)                               # (L, 2*KE)
    dft = np.zeros((K_DFT, 2 * KE), dtype=np.float64)          # (240, 256)
    dft[:L] = M                                                # rows 200..239 stay 0

    full = mel_banks(NUM_BINS, N_FFT, SAMP_FREQ, LOW_FREQ, HIGH_FREQ)   # (F, 129)
    # Build-time guards (review correctness concern): dropping DFT bin 0 and the
    # Nyquist bin is only lossless because they carry (numerically) zero mel weight
    # for these opts (low_freq > 0, high_freq == Nyquist).
    assert float(np.abs(full[:, 0]).max()) < 1e-6, "DFT bin 0 has mel weight"
    assert float(np.abs(full[:, K_BINS - 1]).max()) < 1e-6, "Nyquist bin has mel weight"
    melKE = np.ascontiguousarray(full.T[:KE])                  # (128, F)
    mel2 = np.concatenate([melKE, melKE], axis=0)              # (256, F)
    return dft.astype(np.float32), mel2.astype(np.float32)


@functools.lru_cache(maxsize=None)
def _device_constants(compute_dtype):
    dft, mel2 = _host_constants()
    return jnp.asarray(dft, dtype=compute_dtype), jnp.asarray(mel2)


# --------------------------------- kernel ------------------------------------
def fbank_kernel(chunks_ref, dftm_ref, mel2_ref, out_ref):
    # chunks_ref: (Bb, block_t + N_SUB - 1, HOP)  raw waveform hop chunks
    # dftm_ref:   (240, 256)  folded preprocessing + packed rDFT (f32 or bf16)
    # mel2_ref:   (256, F)    mel filterbank duplicated for the re/im halves
    # out_ref:    (Bb, block_t, F)  un-normalised log-mel features
    block_b = out_ref.shape[0]
    block_t = out_ref.shape[1]
    hop = chunks_ref.shape[2]

    # im2col: frame t spans chunks t, t+1, t+2  -> (Bb*block_t, 240), built once.
    x = jnp.concatenate(
        [chunks_ref[:, s:s + block_t, :] for s in range(N_SUB)], axis=-1)
    x = x.reshape(block_b * block_t, N_SUB * hop).astype(dftm_ref.dtype)

    # Single fat-K MXU pass (K=240, ~94% K utilisation), f32 accumulation.
    acc = jnp.dot(x, dftm_ref[...], preferred_element_type=jnp.float32)   # (rows, 256)

    # Power spectrum folded into the mel matmul: (acc*acc) @ [mel; mel].
    mel = jnp.dot(acc * acc, mel2_ref[...], preferred_element_type=jnp.float32)
    feats = jnp.log(jnp.maximum(mel, EPS))                                # (rows, F)

    out_ref[...] = feats.reshape(block_b, block_t, -1)


# --------------------------------- wrapper ------------------------------------
def _choose_blocks(B: int, T: int, target_rows: int = 512, max_rows: int = 2048):
    """Pick (block_b, block_t, n_t_tiles): rows/step ~512-1024 (amortise per-step
    overhead on v5e/v6e), T tiled so VMEM stays bounded (v7x 64 MiB), and >= 2 grid
    steps whenever B >= 2 so both v7x TensorCores get work."""
    if T <= max_rows:
        block_t, n_tt = T, 1
    else:
        block_t = 512                                   # multiple of 8
        n_tt = (T + block_t - 1) // block_t
    block_b = 1
    for d in range(1, B + 1):
        if B % d == 0 and d * block_t <= max_rows:
            block_b = d
            if d * block_t >= target_rows:
                break
    if (B // block_b) * n_tt < 2 and B >= 2:
        block_b = max(d for d in range(1, B // 2 + 1) if B % d == 0)
    return block_b, block_t, n_tt


def fbank(waves: jnp.ndarray, compute_dtype=jnp.float32) -> jnp.ndarray:
    """waves: (B, num_samples) float32 -> (B, T, F) float32 (CMN applied)."""
    B, num_samples = waves.shape
    T = 1 + (num_samples - FRAME_LEN) // FRAME_SHIFT           # snip_edges=True
    block_b, block_t, n_tt = _choose_blocks(B, T)
    T_pad = block_t * n_tt
    n_ch_tile = block_t + N_SUB - 1
    total_chunks = T_pad + N_SUB - 1
    total = total_chunks * HOP

    # No full-array jnp.pad (review item): samples past the last real frame only hit
    # zero rows of the DFT matrix, so real trailing samples are harmless; append zeros
    # only for the samples we don't have.
    w = waves.astype(jnp.float32)
    if num_samples >= total:
        w = w[:, :total]
    else:
        w = jnp.concatenate(
            [w, jnp.zeros((B, total - num_samples), jnp.float32)], axis=1)
    chunks = w.reshape(B, total_chunks, HOP)                   # (B, T_pad+2, 80)

    if n_tt == 1:
        windowed = chunks.reshape(B, 1, total_chunks, HOP)     # free reshape
    else:
        # Overlapping T-tiles (2-chunk overlap) built in the wrapper so the kernel
        # BlockSpec stays a plain non-overlapping block; ~ (1 + 2/block_t)x copy.
        idx = (np.arange(n_tt)[:, None] * block_t
               + np.arange(n_ch_tile)[None, :])                # (n_tt, block_t+2)
        windowed = chunks[:, idx, :]                           # (B, n_tt, block_t+2, 80)

    dftm, mel2 = _device_constants(compute_dtype)              # cached device constants

    grid = (B // block_b, n_tt)
    cost = pl.CostEstimate(
        flops=int(2 * B * T_pad * (K_DFT * 2 * KE + 2 * KE * NUM_BINS)),
        transcendentals=int(B * T_pad * NUM_BINS),
        bytes_accessed=int(4 * (B * n_tt * n_ch_tile * HOP + B * T_pad * NUM_BINS)
                           + dftm.dtype.itemsize * dftm.size + 4 * mel2.size),
    )

    out = pl.pallas_call(
        fbank_kernel,
        out_shape=jax.ShapeDtypeStruct((B, T_pad, NUM_BINS), jnp.float32),
        grid_spec=pltpu.PrefetchScalarGridSpec(
            num_scalar_prefetch=0,
            grid=grid,
            in_specs=[
                pl.BlockSpec((block_b, None, n_ch_tile, HOP),
                             lambda b, t: (b, t, 0, 0)),
                pl.BlockSpec((K_DFT, 2 * KE), lambda b, t: (0, 0)),
                pl.BlockSpec((2 * KE, NUM_BINS), lambda b, t: (0, 0)),
            ],
            out_specs=pl.BlockSpec((block_b, block_t, NUM_BINS),
                                   lambda b, t: (b, t, 0)),
        ),
        compiler_params=pltpu.CompilerParams(
            dimension_semantics=("parallel", "parallel")),
        cost_estimate=cost,
    )(windowed, dftm, mel2)

    feats = out[:, :T, :]
    # Per-utterance CMN as a tiny second pass over the (B, T, F) output, so no kernel
    # intermediate has to span the whole utterance (v7x VMEM item).
    return feats - jnp.mean(feats, axis=1, keepdims=True)


# ----------------------------- pure-JAX reference ----------------------------
def fbank_ref(waves: jnp.ndarray) -> jnp.ndarray:
    B, num_samples = waves.shape
    T = 1 + (num_samples - FRAME_LEN) // FRAME_SHIFT
    L, F = FRAME_LEN, NUM_BINS
    idx = (jnp.arange(T)[:, None] * FRAME_SHIFT + jnp.arange(L)[None, :])
    x = waves[:, idx].astype(jnp.float32)                      # (B, T, L)
    x = x - jnp.mean(x, axis=2, keepdims=True)
    prev = jnp.concatenate([x[:, :, :1], x[:, :, :-1]], axis=2)
    x = x - PREEMPH * prev
    x = x * jnp.asarray(povey_window(L).astype(np.float32))[None, None, :]
    cos_m, sin_m = dft_matrices(L, N_FFT)
    re = jnp.einsum('btl,lk->btk', x, jnp.asarray(cos_m))
    im = jnp.einsum('btl,lk->btk', x, jnp.asarray(sin_m))
    power = re * re + im * im
    melT = jnp.asarray(mel_banks(F, N_FFT, SAMP_FREQ, LOW_FREQ, HIGH_FREQ).T)
    feats = jnp.log(jnp.maximum(jnp.einsum('btk,kf->btf', power, melT), EPS))
    return feats - jnp.mean(feats, axis=1, keepdims=True)


if __name__ == "__main__":
    B = 2
    T = 8
    num_samples = FRAME_LEN + (T - 1) * FRAME_SHIFT            # 760

    key = jax.random.PRNGKey(0)
    # synthetic 16-bit-ish waveform samples (kaldi works on raw sample values)
    waves = jax.random.normal(key, (B, num_samples), dtype=jnp.float32) * 1000.0

    out = jax.block_until_ready(fbank(waves))
    ref = fbank_ref(waves)
    assert out.shape == (B, T, NUM_BINS)
    np.testing.assert_allclose(np.asarray(out), np.asarray(ref),
                               rtol=2e-3, atol=2e-3)

    # Optional bf16 fast path (review item): ~2-3x MXU throughput, smoke-tested at a
    # loose tolerance only (bf16 rounding gives O(1e-2) log-mel error).
    out_bf16 = jax.block_until_ready(fbank(waves, compute_dtype=jnp.bfloat16))
    np.testing.assert_allclose(np.asarray(out_bf16), np.asarray(ref),
                               rtol=0.25, atol=0.25)

    print("KERNEL_OK")
</pallas_src>

<mosaic_0001>
module attributes {stable_mosaic.version = 11 : i64} {
  func.func @fbank_kernel(%arg0: i32, %arg1: i32, %arg2: memref<1x1x10x80xf32, #tpu.memory_space<vmem>>, %arg3: memref<240x256xf32, #tpu.memory_space<vmem>>, %arg4: memref<256x23xf32, #tpu.memory_space<vmem>>, %arg5: memref<1x8x23xf32, #tpu.memory_space<vmem>>) attributes {dimension_semantics = [#tpu.dimension_semantics<parallel>, #tpu.dimension_semantics<parallel>], iteration_bounds = array<i64: 2, 1>, scalar_prefetch = 0 : i64, scratch_operands = 0 : i64, tpu.core_type = #tpu.core_type<tc>, window_params = [{transform_indices = @transform_0, window_bounds = array<i64: 1, 1, 10, 80>}, {pipeline_mode = #tpu.pipeline_mode<synchronous>, transform_indices = @transform_1, window_bounds = array<i64: 240, 256>}, {pipeline_mode = #tpu.pipeline_mode<synchronous>, transform_indices = @transform_2, window_bounds = array<i64: 256, 23>}, {transform_indices = @transform_3, window_bounds = array<i64: 1, 8, 23>}]} {
    %c0 = arith.constant 0 : index
    %c0_0 = arith.constant 0 : index
    %c0_1 = arith.constant 0 : index
    %c0_2 = arith.constant 0 : index
    %0 = vector.load %arg2[%c0, %c0_0, %c0_1, %c0_2] : memref<1x1x10x80xf32, #tpu.memory_space<vmem>>, vector<1x1x8x80xf32>
    %1 = vector.shape_cast %0 : vector<1x1x8x80xf32> to vector<1x8x80xf32>
    %c0_3 = arith.constant 0 : index
    %c0_4 = arith.constant 0 : index
    %c1 = arith.constant 1 : index
    %c0_5 = arith.constant 0 : index
    %2 = vector.load %arg2[%c0_3, %c0_4, %c1, %c0_5] : memref<1x1x10x80xf32, #tpu.memory_space<vmem>>, vector<1x1x8x80xf32>
    %3 = vector.shape_cast %2 : vector<1x1x8x80xf32> to vector<1x8x80xf32>
    %c0_6 = arith.constant 0 : index
    %c0_7 = arith.constant 0 : index
    %c2 = arith.constant 2 : index
    %c0_8 = arith.constant 0 : index
    %4 = vector.load %arg2[%c0_6, %c0_7, %c2, %c0_8] : memref<1x1x10x80xf32, #tpu.memory_space<vmem>>, vector<1x1x8x80xf32>
    %5 = vector.shape_cast %4 : vector<1x1x8x80xf32> to vector<1x8x80xf32>
    %6 = tpu.concatenate %1, %3, %5 in 2 : vector<1x8x80xf32>, vector<1x8x80xf32>, vector<1x8x80xf32> -> vector<1x8x240xf32>
    %7 = vector.shape_cast %6 : vector<1x8x240xf32> to vector<8x240xf32>
    %c0_9 = arith.constant 0 : index
    %c0_10 = arith.constant 0 : index
    %8 = vector.load %arg3[%c0_9, %c0_10] : memref<240x256xf32, #tpu.memory_space<vmem>>, vector<240x256xf32>
    %cst = arith.constant dense<0.000000e+00> : vector<8x256xf32>
    %9 = tpu.matmul %7, %8, %cst {dimension_numbers = #tpu.dot_dimension_numbers<[1], [0], [0], [1], [0, 0, 1, 1], [], []>} : vector<8x240xf32>, vector<240x256xf32>, vector<8x256xf32> -> vector<8x256xf32>
    %10 = arith.mulf %9, %9 : vector<8x256xf32>
    %c0_11 = arith.constant 0 : index
    %c0_12 = arith.constant 0 : index
    %11 = vector.load %arg4[%c0_11, %c0_12] : memref<256x23xf32, #tpu.memory_space<vmem>>, vector<256x23xf32>
    %cst_13 = arith.constant dense<0.000000e+00> : vector<8x23xf32>
    %12 = tpu.matmul %10, %11, %cst_13 {dimension_numbers = #tpu.dot_dimension_numbers<[1], [0], [0], [1], [0, 0, 1, 1], [], []>} : vector<8x256xf32>, vector<256x23xf32>, vector<8x23xf32> -> vector<8x23xf32>
    %cst_14 = arith.constant 1.1920929E-7 : f32
    %13 = vector.broadcast %cst_14 : f32 to vector<8x23xf32>
    %14 = arith.maximumf %12, %13 : vector<8x23xf32>
    %15 = math.log %14 : vector<8x23xf32>
    %16 = vector.shape_cast %15 : vector<8x23xf32> to vector<1x8x23xf32>
    %c0_15 = arith.constant 0 : index
    %c0_16 = arith.constant 0 : index
    %c0_17 = arith.constant 0 : index
    %17 = vector.load %arg5[%c0_15, %c0_16, %c0_17] : memref<1x8x23xf32, #tpu.memory_space<vmem>>, vector<1x8x23xf32>
    tpu.vector_store %arg5[%c0_15, %c0_16, %c0_17], %16 {strides = array<i32>} : memref<1x8x23xf32, #tpu.memory_space<vmem>>, vector<1x8x23xf32>,
    return
  }
  func.func @transform_0(%arg0: i32, %arg1: i32) -> (i32, i32, i32, i32) {
    %c0_i32 = arith.constant 0 : i32
    %c0_i32_0 = arith.constant 0 : i32
    %c0_i32_1 = arith.constant 0 : i32
    return %arg0, %arg1, %c0_i32, %c0_i32_0 : i32, i32, i32, i32
  }
  func.func @transform_1(%arg0: i32, %arg1: i32) -> (i32, i32) {
    %c0_i32 = arith.constant 0 : i32
    %c0_i32_0 = arith.constant 0 : i32
    %c0_i32_1 = arith.constant 0 : i32
    return %c0_i32, %c0_i32_0 : i32, i32
  }
  func.func @transform_2(%arg0: i32, %arg1: i32) -> (i32, i32) {
    %c0_i32 = arith.constant 0 : i32
    %c0_i32_0 = arith.constant 0 : i32
    %c0_i32_1 = arith.constant 0 : i32
    return %c0_i32, %c0_i32_0 : i32, i32
  }
  func.func @transform_3(%arg0: i32, %arg1: i32) -> (i32, i32, i32) {
    %c0_i32 = arith.constant 0 : i32
    %c0_i32_0 = arith.constant 0 : i32
    return %arg0, %arg1, %c0_i32 : i32, i32, i32
  }
}

</mosaic_0001>

<llo_original>
// kernel: tpu_custom_call.1
$region0: #{tpu_custom_call.1}
  #allocation0 [shape = 'u32[]', space=smem, size = 0x4, offset = 0x4, fixed_abs, tag = 'smem constant byte address 0x4 - core index']
  #allocation1 [shape = 'u32[72,128]{1,0:T(1,128)}', space=vmem, size = 0x9000, scoped, tag = 'internal scratch']
  %s0 = inlined_call_operand.vmem [shape: f32[2,1,10,80], index: 0, kind: input, shape index: {}]
  %s1 = inlined_call_operand.hbm [shape: f32[240,256], index: 1, kind: input, shape index: {}]
  %s2 = inlined_call_operand.vmem [shape: f32[256,23], index: 2, kind: input, shape index: {}]
  %s3 = inlined_call_operand.hbm [shape: f32[2,8,23], index: 3, kind: output, shape index: {}]
  %s4 = sld [smem:[#allocation0]]
  $region49: #{tpu_custom_call.1} parent=0
    _
  %s6 = ssub.s32 1, %s4
  %s7 = scalar_select 0, %s6, %s4
  $region1: #{tpu_custom_call.1} parent=0
    #allocation2 [shape = 'u8[245760]{0}', space=vmem, size = 0x3c000, scoped, tag = 'input window, operand 1, single buffered']
    #allocation3 [shape = 's32[2]{0}', space=sflag, size = 0x8, scoped, tag = 'scoped memory for tpu_custom_call.1']
    #allocation4 [shape = 's32[2]{0}', space=sflag, size = 0x8, scoped, tag = 'scoped memory for tpu_custom_call.1']
    #allocation5 [shape = 'u8[8192]{0}', space=vmem, size = 0x2000, scoped, tag = 'output window, operand 0']
    %8 = vsyncpa [#allocation3], 0
    %9 = vsyncpa [#allocation4], 0
    %s10 = scalar_lea.sflag [#allocation4], 1
    %11 = vsyncpa %s10, 0
    loop: start=0, step=1, limit=4
    $region2: #{tpu_custom_call.1} parent=1 // loop_pre_header
      _
    $region3: #{tpu_custom_call.1} parent=1 // loop_header
      %s13 = sphi 0, %s17
      %p14 = scmp.ge.s32.totalorder %s13, 4
      %s20 = sphi 0, %s32
      %s21 = sphi 0, %s28
      %s22 = sphi 0, %s20
      %s23 = sphi 0, %s21
      %s24 = sphi 0, %s22
      %s25 = sphi 0, %s23
      %s37 = sphi 0, %s39
      %s40 = sphi 0, %s37
      %s41 = sphi 0, %s40
      %s57 = sphi 0, %s41
      %s61 = sphi 0, %s61
      %s63 = sphi 0, %s61
      %s64 = sphi 0, %s63
      %s78 = sphi 0, %s64
      %s82 = sphi 0, %s82
      %s84 = sphi 0, %s82
      %s85 = sphi 0, %s84
      %s99 = sphi 0, %s85
      %s107 = sphi 0, %s109
      %s110 = sphi 0, %s107
      %s111 = sphi 0, %s110
      %s127 = sphi 0, %s111
    $region4: #{tpu_custom_call.1} parent=1 // loop_header_branch
      %16 = sbr.rel (%p14) target = $region8
    $region5: #{tpu_custom_call.1} parent=1 // loop_body
      %s18 = ssub.s32 %s13, 1
      %s19 = ssub.s32 %s13, 2
      %s26 = sadd.s32 1, %s21
      %p27 = scmp.ge.s32.totalorder %s26, 1
      %s28 = scalar_select %p27, 0, %s26
      %s29 = sadd.s32 1, %s20
      %s30 = scalar_select %p27, %s29, %s20
      %p31 = scmp.ge.s32.totalorder %s30, 2
      %s32 = scalar_select %p31, 0, %s30
      %s33 = ssub.s32 %s20, %s32
      %s34 = ssub.s32 %s21, %s28
      %s35 = sor.u32 %s33, %s34
      %p36 = scmp.eq.s32.totalorder %s35, 0
      %s38 = sadd.s32 %s37, 1
      %s39 = scalar_select %p36, %s37, %s38
      %p42 = pneg %p36
      %p43 = scmp.eq.s32.totalorder %s13, 1
      %p44 = por %p42, %p43
      %p45 = scmp.ne.s32.totalorder %s37, %s40
      %p46 = scmp.eq.s32.totalorder %s13, 0
      %p47 = por %p45, %p46
      %p48 = scmp.ne.s32.totalorder %s37, %s40
      %p49 = scmp.eq.s32.totalorder %s18, 1
      %p50 = por %p48, %p49
      %p51 = scmp.ne.s32.totalorder %s40, %s41
      %p52 = scmp.eq.s32.totalorder %s18, 0
      %p53 = por %p51, %p52
      %p54 = scmp.ne.s32.totalorder %s40, %s41
      %p55 = scmp.eq.s32.totalorder %s19, 1
      %p56 = por %p54, %p55
      %p58 = scmp.ne.s32.totalorder %s41, %s57
      %p59 = scmp.eq.s32.totalorder %s19, 0
      %p60 = por %p58, %p59
      %s62 = sadd.s32 %s61, 1
      %p65 = scmp.eq.s32.totalorder %s13, 1
      %p66 = scmp.ne.s32.totalorder %s61, %s63
      %p67 = scmp.eq.s32.totalorder %s13, 0
      %p68 = por %p66, %p67
      %p69 = scmp.ne.s32.totalorder %s61, %s63
      %p70 = scmp.eq.s32.totalorder %s18, 1
      %p71 = por %p69, %p70
      %p72 = scmp.ne.s32.totalorder %s63, %s64
      %p73 = scmp.eq.s32.totalorder %s18, 0
      %p74 = por %p72, %p73
      %p75 = scmp.ne.s32.totalorder %s63, %s64
      %p76 = scmp.eq.s32.totalorder %s19, 1
      %p77 = por %p75, %p76
      %p79 = scmp.ne.s32.totalorder %s64, %s78
      %p80 = scmp.eq.s32.totalorder %s19, 0
      %p81 = por %p79, %p80
      %s83 = sadd.s32 %s82, 1
      %p86 = scmp.eq.s32.totalorder %s13, 1
      %p87 = scmp.ne.s32.totalorder %s82, %s84
      %p88 = scmp.eq.s32.totalorder %s13, 0
      %p89 = por %p87, %p88
      %p90 = scmp.ne.s32.totalorder %s82, %s84
      %p91 = scmp.eq.s32.totalorder %s18, 1
      %p92 = por %p90, %p91
      %p93 = scmp.ne.s32.totalorder %s84, %s85
      %p94 = scmp.eq.s32.totalorder %s18, 0
      %p95 = por %p93, %p94
      %p96 = scmp.ne.s32.totalorder %s84, %s85
      %p97 = scmp.eq.s32.totalorder %s19, 1
      %p98 = por %p96, %p97
      %p100 = scmp.ne.s32.totalorder %s85, %s99
      %p101 = scmp.eq.s32.totalorder %s19, 0
      %p102 = por %p100, %p101
      %s103 = ssub.s32 %s20, %s32
      %s104 = ssub.s32 %s21, %s28
      %s105 = sor.u32 %s103, %s104
      %p106 = scmp.eq.s32.totalorder %s105, 0
      %s108 = sadd.s32 %s107, 1
      %s109 = scalar_select %p106, %s107, %s108
      %p112 = pneg %p106
      %p113 = scmp.eq.s32.totalorder %s13, 1
      %p114 = por %p112, %p113
      %p115 = scmp.ne.s32.totalorder %s107, %s110
      %p116 = scmp.eq.s32.totalorder %s13, 0
      %p117 = por %p115, %p116
      %p118 = scmp.ne.s32.totalorder %s107, %s110
      %p119 = scmp.eq.s32.totalorder %s18, 1
      %p120 = por %p118, %p119
      %p121 = scmp.ne.s32.totalorder %s110, %s111
      %p122 = scmp.eq.s32.totalorder %s18, 0
      %p123 = por %p121, %p122
      %p124 = scmp.ne.s32.totalorder %s110, %s111
      %p125 = scmp.eq.s32.totalorder %s19, 1
      %p126 = por %p124, %p125
      %p128 = scmp.ne.s32.totalorder %s111, %s127
      %p129 = scmp.eq.s32.totalorder %s19, 0
      %p130 = por %p128, %p129
      %p131 = scmp.le.s32.totalorder 1, %s13
      %p132 = scmp.lt.s32.totalorder %s13, 3
      %p133 = pnand %p131, %p132
      %p134 = pneg %p133
      // Predicated region
      $region9: #{tpu_custom_call.1} parent=5 // pred_check
        _
      $region10: #{tpu_custom_call.1} parent=5 // pred_check_branch
        %136 = sbr.rel (%p133) target = $region12
      $region11: #{tpu_custom_call.1} parent=5 // pred_region
        %s137 = ssub.s32 %s13, 1
        // Predicated region
        $region13: #{tpu_custom_call.1} parent=11 // pred_check
          %p138 = pneg %p74
        $region14: #{tpu_custom_call.1} parent=11 // pred_check_branch
          %140 = sbr.rel (%p138) target = $region16
        $region15: #{tpu_custom_call.1} parent=11 // pred_region
          %142 = vsyncadd [#allocation3], 0
          %s143 = sshll.u32 %s1, 4
          %s144 = int_to_ptr.hbm [resolvable:$true] %s143
          %s145 = sshll.u32 [#allocation2], 4
          %s146 = int_to_ptr.vmem [resolvable:$true] %s145
          %151 = dma.hbm_to_vmem [thread:$0]  %s144, 7680, %s146, [#allocation3], 256, 256, 16
        $region16: #{tpu_custom_call.1} parent=11 // pred_fallthru
          _
        // Predicated region
        $region17: #{tpu_custom_call.1} parent=11 // pred_check
          %p152 = pneg %p95
        $region18: #{tpu_custom_call.1} parent=11 // pred_check_branch
          %154 = sbr.rel (%p152) target = $region20
        $region19: #{tpu_custom_call.1} parent=11 // pred_region
          _
        $region20: #{tpu_custom_call.1} parent=11 // pred_fallthru
          _
      $region12: #{tpu_custom_call.1} parent=5 // pred_fallthru
        _
      %p155 = scmp.lt.s32.totalorder %s13, 2
      // Predicated region
      $region21: #{tpu_custom_call.1} parent=5 // pred_check
        %p156 = pneg %p155
      $region22: #{tpu_custom_call.1} parent=5 // pred_check_branch
        %158 = sbr.rel (%p156) target = $region24
      $region23: #{tpu_custom_call.1} parent=5 // pred_region
        // Predicated region
        $region25: #{tpu_custom_call.1} parent=23 // pred_check
          %p159 = pneg %p47
        $region26: #{tpu_custom_call.1} parent=23 // pred_check_branch
          %161 = sbr.rel (%p159) target = $region28
        $region27: #{tpu_custom_call.1} parent=23 // pred_region
          %p162 = scmp.lt.s32.totalorder %s20, 1
          %s163 = scalar_select %p162, %s20, 1
          %p164 = scmp.lt.s32.totalorder %s21, 0
          %s165 = scalar_select %p164, %s21, 0
          %s166 = smul.addr %s165, 2
          %s167 = smul.addr %s163, 2
          %s168 = sadd.s32 %s166, %s167
          %s169 = smul.addr %s168, 8
          %s170 = scalar_lea.vmem %s0, %s169
        $region28: #{tpu_custom_call.1} parent=23 // pred_fallthru
          _
      $region24: #{tpu_custom_call.1} parent=5 // pred_fallthru
        _
      %p171 = scmp.le.s32.totalorder 1, %s13
      %p172 = scmp.lt.s32.totalorder %s13, 3
      %p173 = pnand %p171, %p172
      %p174 = pneg %p173
      // Predicated region
      $region29: #{tpu_custom_call.1} parent=5 // pred_check
        _
      $region30: #{tpu_custom_call.1} parent=5 // pred_check_branch
        %176 = sbr.rel (%p173) target = $region32
      $region31: #{tpu_custom_call.1} parent=5 // pred_region
        %s177 = ssub.s32 %s13, 1
        // Predicated region
        $region33: #{tpu_custom_call.1} parent=31 // pred_check
          %p178 = pneg %p74
        $region34: #{tpu_custom_call.1} parent=31 // pred_check_branch
          %180 = sbr.rel (%p178) target = $region36
        $region35: #{tpu_custom_call.1} parent=31 // pred_region
          %182 = dma.done [#allocation3], 7680
        $region36: #{tpu_custom_call.1} parent=31 // pred_fallthru
          _
        %p183 = scmp.lt.s32.totalorder %s22, 1
        %s184 = scalar_select %p183, %s22, 1
        %p185 = scmp.lt.s32.totalorder %s23, 0
        %s186 = scalar_select %p185, %s23, 0
        %s187 = smul.addr %s186, 2
        %s188 = smul.addr %s184, 2
        %s189 = sadd.s32 %s187, %s188
        %s190 = smul.addr %s189, 8
        %s191 = scalar_lea.vmem %s0, %s190
        %p192 = pneg %p53
        %p193 = pneg %p50
        %p194 = pneg %p74
        %p195 = pneg %p71
        %p196 = pneg %p95
        %p197 = pneg %p92
        %p198 = pneg %p123
        %p199 = pneg %p120
        %s200 = sand.u32 %s110, 1
        %s201 = scalar_lea.sflag [#allocation4], %s200
        %s202 = sand.u32 %s110, 1
        %s203 = smul.addr %s202, 8
        %s204 = scalar_lea.vmem [#allocation5], %s203
        %p205 = scmp.lt.s32.totalorder %s22, 1
        %s206 = scalar_select %p205, %s22, 1
        %p207 = scmp.lt.s32.totalorder %s23, 0
        %s208 = scalar_select %p207, %s23, 0
        %s209 = smul.addr %s208, 2
        %s210 = smul.addr %s206, 2
        %s211 = sadd.s32 %s209, %s210
        %s212 = smul.addr %s211, 8
        %s213 = scalar_lea.vmem %s0, %s212
        %v214 = vld [vmem:[%s213] sm:$0xff]
        %v215 = vld [vmem:[%s213 + $0x1] sm:$0xff]
        %v216 = vld [vmem:[%s213 + $0x2] sm:$0xff]
        %218 = vrot.lane.b32.xlu0 %v215, 80
        %v219 = vpop.permute.xlu0 %218
        %222 = vrot.lane.b32.xlu0 %v216, 32
        %v223 = vpop.permute.xlu0 %222
        %vm225 = vcmask 654336
        %v226 = vsel %vm225, %v214, %v219
        %vm227 = vcmask 261120
        %v228 = vsel %vm227, %v219, %v223
        %v229 = vld [vmem:[#allocation2] sm:$0xff]
        %v230 = vld [vmem:[#allocation2 + $0x8] sm:$0xff]
        %v231 = vld [vmem:[#allocation2 + $0x10] sm:$0xff]
        %v232 = vld [vmem:[#allocation2 + $0x18] sm:$0xff]
        %v233 = vld [vmem:[#allocation2 + $0x20] sm:$0xff]
        %v234 = vld [vmem:[#allocation2 + $0x28] sm:$0xff]
        %v235 = vld [vmem:[#allocation2 + $0x30] sm:$0xff]
        %v236 = vld [vmem:[#allocation2 + $0x38] sm:$0xff]
        %v237 = vld [vmem:[#allocation2 + $0x40] sm:$0xff]
        %v238 = vld [vmem:[#allocation2 + $0x48] sm:$0xff]
        %v239 = vld [vmem:[#allocation2 + $0x50] sm:$0xff]
        %v240 = vld [vmem:[#allocation2 + $0x58] sm:$0xff]
        %v241 = vld [vmem:[#allocation2 + $0x60] sm:$0xff]
        %v242 = vld [vmem:[#allocation2 + $0x68] sm:$0xff]
        %v243 = vld [vmem:[#allocation2 + $0x70] sm:$0xff]
        %v244 = vld [vmem:[#allocation2 + $0x78] sm:$0xff]
        %v245 = vld [vmem:[#allocation2 + $0x80] sm:$0xff]
        %v246 = vld [vmem:[#allocation2 + $0x88] sm:$0xff]
        %v247 = vld [vmem:[#allocation2 + $0x90] sm:$0xff]
        %v248 = vld [vmem:[#allocation2 + $0x98] sm:$0xff]
        %v249 = vld [vmem:[#allocation2 + $0xa0] sm:$0xff]
        %v250 = vld [vmem:[#allocation2 + $0xa8] sm:$0xff]
        %v251 = vld [vmem:[#allocation2 + $0xb0] sm:$0xff]
        %v252 = vld [vmem:[#allocation2 + $0xb8] sm:$0xff]
        %v253 = vld [vmem:[#allocation2 + $0xc0] sm:$0xff]
        %v254 = vld [vmem:[#allocation2 + $0xc8] sm:$0xff]
        %v255 = vld [vmem:[#allocation2 + $0xd0] sm:$0xff]
        %v256 = vld [vmem:[#allocation2 + $0xd8] sm:$0xff]
        %v257 = vld [vmem:[#allocation2 + $0xe0] sm:$0xff]
        %v258 = vld [vmem:[#allocation2 + $0xe8] sm:$0xff]
        %v259 = vld [vmem:[#allocation2 + $0xf0] sm:$0xff]
        %v260 = vld [vmem:[#allocation2 + $0xf8] sm:$0xff]
        %v261 = vld [vmem:[#allocation2 + $0x100] sm:$0xff]
        %v262 = vld [vmem:[#allocation2 + $0x108] sm:$0xff]
        %v263 = vld [vmem:[#allocation2 + $0x110] sm:$0xff]
        %v264 = vld [vmem:[#allocation2 + $0x118] sm:$0xff]
        %v265 = vld [vmem:[#allocation2 + $0x120] sm:$0xff]
        %v266 = vld [vmem:[#allocation2 + $0x128] sm:$0xff]
        %v267 = vld [vmem:[#allocation2 + $0x130] sm:$0xff]
        %v268 = vld [vmem:[#allocation2 + $0x138] sm:$0xff]
        %v269 = vld [vmem:[#allocation2 + $0x140] sm:$0xff]
        %v270 = vld [vmem:[#allocation2 + $0x148] sm:$0xff]
        %v271 = vld [vmem:[#allocation2 + $0x150] sm:$0xff]
        %v272 = vld [vmem:[#allocation2 + $0x158] sm:$0xff]
        %v273 = vld [vmem:[#allocation2 + $0x160] sm:$0xff]
        %v274 = vld [vmem:[#allocation2 + $0x168] sm:$0xff]
        %v275 = vld [vmem:[#allocation2 + $0x170] sm:$0xff]
        %v276 = vld [vmem:[#allocation2 + $0x178] sm:$0xff]
        %v277 = vld [vmem:[#allocation2 + $0x180] sm:$0xff]
        %v278 = vld [vmem:[#allocation2 + $0x188] sm:$0xff]
        %v279 = vld [vmem:[#allocation2 + $0x190] sm:$0xff]
        %v280 = vld [vmem:[#allocation2 + $0x198] sm:$0xff]
        %v281 = vld [vmem:[#allocation2 + $0x1a0] sm:$0xff]
        %v282 = vld [vmem:[#allocation2 + $0x1a8] sm:$0xff]
        %v283 = vld [vmem:[#allocation2 + $0x1b0] sm:$0xff]
        %v284 = vld [vmem:[#allocation2 + $0x1b8] sm:$0xff]
        %v285 = vld [vmem:[#allocation2 + $0x1c0] sm:$0xff]
        %v286 = vld [vmem:[#allocation2 + $0x1c8] sm:$0xff]
        %v287 = vld [vmem:[#allocation2 + $0x1d0] sm:$0xff]
        %v288 = vld [vmem:[#allocation2 + $0x1d8] sm:$0xff]
        %vm289 = vcmask 916480
        %v291 = vsel %vm289, %v228, 0
        %293 = vmatpush.msra.mxu0 %v259
        %294 = vmatpush.msra.mxu0 %v257
        %295 = vmatpush.msra.mxu0 %v255
        %296 = vmatpush.msra.mxu0 %v253
        %297 = vmatpush.msra.mxu0 %v251
        %298 = vmatpush.msra.mxu0 %v249
        %299 = vmatpush.msra.mxu0 %v247
        %300 = vmatpush.msra.mxu0 %v245
        %301 = vmatpush.msra.mxu0 %v243
        %302 = vmatpush.msra.mxu0 %v241
        %303 = vmatpush.msra.mxu0 %v239
        %304 = vmatpush.msra.mxu0 %v237
        %305 = vmatpush.msra.mxu0 %v235
        %306 = vmatpush.msra.mxu0 %v233
        %307 = vmatpush.msra.mxu0 %v231
        %308 = vmatpush.msra.mxu0 %v229
        %309 = vmatmul.f32.gmra.mxu0 %v226
        %v310 = vpop.f32.mrf.mxu0
        %v311 = vadd.f32 0.0, %v310
        %312 = vdwg.mxu0
        %313 = vmatpush.msra.mxu0 0.0
        %314 = vmatpush.msra.mxu0 0.0
        %315 = vmatpush.msra.mxu0 %v287
        %316 = vmatpush.msra.mxu0 %v285
        %317 = vmatpush.msra.mxu0 %v283
        %318 = vmatpush.msra.mxu0 %v281
        %319 = vmatpush.msra.mxu0 %v279
        %320 = vmatpush.msra.mxu0 %v277
        %321 = vmatpush.msra.mxu0 %v275
        %322 = vmatpush.msra.mxu0 %v273
        %323 = vmatpush.msra.mxu0 %v271
        %324 = vmatpush.msra.mxu0 %v269
        %325 = vmatpush.msra.mxu0 %v267
        %326 = vmatpush.msra.mxu0 %v265
        %327 = vmatpush.msra.mxu0 %v263
        %328 = vmatpush.msra.mxu0 %v261
        %329 = vmatmul.f32.gmra.mxu0 %v291
        %v330 = vpop.f32.mrf.mxu0
        %v331 = vadd.f32 %v311, %v330
        %332 = vdwg.mxu0
        %333 = vmatpush.msra.mxu0 %v260
        %334 = vmatpush.msra.mxu0 %v258
        %335 = vmatpush.msra.mxu0 %v256
        %336 = vmatpush.msra.mxu0 %v254
        %337 = vmatpush.msra.mxu0 %v252
        %338 = vmatpush.msra.mxu0 %v250
        %339 = vmatpush.msra.mxu0 %v248
        %340 = vmatpush.msra.mxu0 %v246
        %341 = vmatpush.msra.mxu0 %v244
        %342 = vmatpush.msra.mxu0 %v242
        %343 = vmatpush.msra.mxu0 %v240
        %344 = vmatpush.msra.mxu0 %v238
        %345 = vmatpush.msra.mxu0 %v236
        %346 = vmatpush.msra.mxu0 %v234
        %347 = vmatpush.msra.mxu0 %v232
        %348 = vmatpush.msra.mxu0 %v230
        %349 = vmatmul.f32.gmra.mxu0 %v226
        %v350 = vpop.f32.mrf.mxu0
        %v351 = vadd.f32 0.0, %v350
        %352 = vdwg.mxu0
        %353 = vmatpush.msra.mxu0 0.0
        %354 = vmatpush.msra.mxu0 0.0
        %355 = vmatpush.msra.mxu0 %v288
        %356 = vmatpush.msra.mxu0 %v286
        %357 = vmatpush.msra.mxu0 %v284
        %358 = vmatpush.msra.mxu0 %v282
        %359 = vmatpush.msra.mxu0 %v280
        %360 = vmatpush.msra.mxu0 %v278
        %361 = vmatpush.msra.mxu0 %v276
        %362 = vmatpush.msra.mxu0 %v274
        %363 = vmatpush.msra.mxu0 %v272
        %364 = vmatpush.msra.mxu0 %v270
        %365 = vmatpush.msra.mxu0 %v268
        %366 = vmatpush.msra.mxu0 %v266
        %367 = vmatpush.msra.mxu0 %v264
        %368 = vmatpush.msra.mxu0 %v262
        %369 = vmatmul.f32.gmra.mxu0 %v291
        %v370 = vpop.f32.mrf.mxu0
        %v371 = vadd.f32 %v351, %v370
        %372 = vdwg.mxu0
        %v373 = vmul.f32 %v331, %v331
        %v374 = vmul.f32 %v371, %v371
        %v375 = vld [vmem:[%s2] sm:$0xff]
        %v376 = vld [vmem:[%s2 + $0x8] sm:$0xff]
        %v377 = vld [vmem:[%s2 + $0x10] sm:$0xff]
        %v378 = vld [vmem:[%s2 + $0x18] sm:$0xff]
        %v379 = vld [vmem:[%s2 + $0x20] sm:$0xff]
        %v380 = vld [vmem:[%s2 + $0x28] sm:$0xff]
        %v381 = vld [vmem:[%s2 + $0x30] sm:$0xff]
        %v382 = vld [vmem:[%s2 + $0x38] sm:$0xff]
        %v383 = vld [vmem:[%s2 + $0x40] sm:$0xff]
        %v384 = vld [vmem:[%s2 + $0x48] sm:$0xff]
        %v385 = vld [vmem:[%s2 + $0x50] sm:$0xff]
        %v386 = vld [vmem:[%s2 + $0x58] sm:$0xff]
        %v387 = vld [vmem:[%s2 + $0x60] sm:$0xff]
        %v388 = vld [vmem:[%s2 + $0x68] sm:$0xff]
        %v389 = vld [vmem:[%s2 + $0x70] sm:$0xff]
        %v390 = vld [vmem:[%s2 + $0x78] sm:$0xff]
        %v391 = vld [vmem:[%s2 + $0x80] sm:$0xff]
        %v392 = vld [vmem:[%s2 + $0x88] sm:$0xff]
        %v393 = vld [vmem:[%s2 + $0x90] sm:$0xff]
        %v394 = vld [vmem:[%s2 + $0x98] sm:$0xff]
        %v395 = vld [vmem:[%s2 + $0xa0] sm:$0xff]
        %v396 = vld [vmem:[%s2 + $0xa8] sm:$0xff]
        %v397 = vld [vmem:[%s2 + $0xb0] sm:$0xff]
        %v398 = vld [vmem:[%s2 + $0xb8] sm:$0xff]
        %v399 = vld [vmem:[%s2 + $0xc0] sm:$0xff]
        %v400 = vld [vmem:[%s2 + $0xc8] sm:$0xff]
        %v401 = vld [vmem:[%s2 + $0xd0] sm:$0xff]
        %v402 = vld [vmem:[%s2 + $0xd8] sm:$0xff]
        %v403 = vld [vmem:[%s2 + $0xe0] sm:$0xff]
        %v404 = vld [vmem:[%s2 + $0xe8] sm:$0xff]
        %v405 = vld [vmem:[%s2 + $0xf0] sm:$0xff]
        %v406 = vld [vmem:[%s2 + $0xf8] sm:$0xff]
        %407 = vmatpush.msra.mxu0 %v390
        %408 = vmatpush.msra.mxu0 %v389
        %409 = vmatpush.msra.mxu0 %v388
        %410 = vmatpush.msra.mxu0 %v387
        %411 = vmatpush.msra.mxu0 %v386
        %412 = vmatpush.msra.mxu0 %v385
        %413 = vmatpush.msra.mxu0 %v384
        %414 = vmatpush.msra.mxu0 %v383
        %415 = vmatpush.msra.mxu0 %v382
        %416 = vmatpush.msra.mxu0 %v381
        %417 = vmatpush.msra.mxu0 %v380
        %418 = vmatpush.msra.mxu0 %v379
        %419 = vmatpush.msra.mxu0 %v378
        %420 = vmatpush.msra.mxu0 %v377
        %421 = vmatpush.msra.mxu0 %v376
        %422 = vmatpush.msra.mxu0 %v375
        %423 = vmatmul.f32.gmra.mxu0 %v373
        %v424 = vpop.f32.mrf.mxu0
        %v425 = vadd.f32 0.0, %v424
        %426 = vdwg.mxu0
        %427 = vmatpush.msra.mxu0 %v406
        %428 = vmatpush.msra.mxu0 %v405
        %429 = vmatpush.msra.mxu0 %v404
        %430 = vmatpush.msra.mxu0 %v403
        %431 = vmatpush.msra.mxu0 %v402
        %432 = vmatpush.msra.mxu0 %v401
        %433 = vmatpush.msra.mxu0 %v400
        %434 = vmatpush.msra.mxu0 %v399
        %435 = vmatpush.msra.mxu0 %v398
        %436 = vmatpush.msra.mxu0 %v397
        %437 = vmatpush.msra.mxu0 %v396
        %438 = vmatpush.msra.mxu0 %v395
        %439 = vmatpush.msra.mxu0 %v394
        %440 = vmatpush.msra.mxu0 %v393
        %441 = vmatpush.msra.mxu0 %v392
        %442 = vmatpush.msra.mxu0 %v391
        %443 = vmatmul.f32.gmra.mxu0 %v374
        %v444 = vpop.f32.mrf.mxu0
        %v445 = vadd.f32 %v425, %v444
        %446 = vdwg.mxu0
        %v447 = vmax.f32 %v445, 1.1920929e-07
        %v448 = vlog2.pop %v447
        %v449 = vmul.f32 %v448, 0.6931472
        %vm450 = vcmask 187392
        %451 = vst.msk [vmem:[%s204] sm:$0xff] %vm450, %v449
        %s452 = sand.u32 %s110, 1
        %s453 = scalar_lea.sflag [#allocation4], %s452
        %s454 = sand.u32 %s110, 1
        %s455 = smul.addr %s454, 8
        %s456 = scalar_lea.vmem [#allocation5], %s455
        // Predicated region
        $region37: #{tpu_custom_call.1} parent=31 // pred_check
          %p457 = pneg %p120
        $region38: #{tpu_custom_call.1} parent=31 // pred_check_branch
          %459 = sbr.rel (%p457) target = $region40
        $region39: #{tpu_custom_call.1} parent=31 // pred_region
          %461 = vsyncadd %s453, 0
          %s462 = sadd.s32 %s23, %s22
          %s463 = smul.addr %s462, 8
          %s464 = scalar_lea.hbm %s3, %s463
          %s466 = sshll.u32 %s456, 4
          %s467 = int_to_ptr.vmem [resolvable:$true] %s466
          %s468 = sshll.u32 %s464, 4
          %s469 = int_to_ptr.hbm [resolvable:$true] %s468
          %471 = dma.vmem_to_hbm [thread:$0]  %s467, 128, %s469, %s453
        $region40: #{tpu_custom_call.1} parent=31 // pred_fallthru
          _
      $region32: #{tpu_custom_call.1} parent=5 // pred_fallthru
        _
      %p472 = scmp.le.s32.totalorder 2, %s13
      // Predicated region
      $region41: #{tpu_custom_call.1} parent=5 // pred_check
        %p473 = pneg %p472
      $region42: #{tpu_custom_call.1} parent=5 // pred_check_branch
        %475 = sbr.rel (%p473) target = $region44
      $region43: #{tpu_custom_call.1} parent=5 // pred_region
        %s476 = ssub.s32 %s13, 2
        // Predicated region
        $region45: #{tpu_custom_call.1} parent=43 // pred_check
          %p477 = pneg %p126
        $region46: #{tpu_custom_call.1} parent=43 // pred_check_branch
          %479 = sbr.rel (%p477) target = $region48
        $region47: #{tpu_custom_call.1} parent=43 // pred_region
          %s480 = sand.u32 %s111, 1
          %s481 = scalar_lea.sflag [#allocation4], %s480
          %s482 = sand.u32 %s111, 1
          %s483 = smul.addr %s482, 8
          %s484 = scalar_lea.vmem [#allocation5], %s483
          %486 = dma.done %s481, 128
        $region48: #{tpu_custom_call.1} parent=43 // pred_fallthru
          _
      $region44: #{tpu_custom_call.1} parent=5 // pred_fallthru
        _
    $region6: #{tpu_custom_call.1} parent=1 // loop_footer
      %s17 = sadd.s32 1, %s13
    $region7: #{tpu_custom_call.1} parent=1 // loop_footer_branch
      %12 = sbr.rel target = $region3
    $region8: #{tpu_custom_call.1} parent=1 // loop_exit
      _
    %487 = vsyncpa [#allocation3], 1
    %s488 = scalar_lea.sflag [#allocation3], 1
    %489 = vsyncpa %s488, 1
    %490 = vsyncpa [#allocation4], 1
    %s491 = scalar_lea.sflag [#allocation4], 1
    %492 = vsyncpa %s491, 1

</llo_original>
